<compile_context>
chip_gen: v7x
topology: tpu7x:2x2x1
jax: 0.10.0
libtpu: 0.0.40
codegen_flags: <defaults>
</compile_context>

<pallas_src>
import jax
import jax.numpy as jnp
from jax import lax
from jax.experimental import pallas as pl
from jax.experimental.pallas import tpu as pltpu


# "NT" contraction: contract LHS dim 1 with RHS dim 1, i.e. h = W @ x^T without
# materializing a transpose.
_NT_DIM_NUMBERS = (((1,), (1,)), ((), ()))


# ----------------------------------------------------------------------------
# Kernel bodies
# ----------------------------------------------------------------------------

def _mlp_tile(x, w0_ref, b0_ref, w1_ref, b1_ref, w2_ref, b2_ref):
    """Shared MLP body for one batch tile.

    x: (tile_n, C_in) elementwise product of the two node embeddings.
    Returns (1, tile_n) lane-dense sigmoid logits (feature-major throughout).
    """
    w0 = w0_ref[...]                                   # (H, C_in) torch layout
    # lin0 -> relu.  NT matmul puts the batch dim on lanes: the (H, tile_n)
    # result is feature-major, so everything downstream is lane-dense.
    # (dropout is identity in eval mode)
    h = lax.dot_general(w0, x.astype(w0.dtype), _NT_DIM_NUMBERS,
                        preferred_element_type=jnp.float32)        # (H, tile_n)
    h = jnp.maximum(h + b0_ref[...], 0.0)

    # lin1 -> relu
    w1 = w1_ref[...]                                   # (H, H)
    h = jnp.dot(w1, h.astype(w1.dtype),
                preferred_element_type=jnp.float32)                # (H, tile_n)
    h = jnp.maximum(h + b1_ref[...], 0.0)

    # Final linear (out_channels == 1): VPU multiply + cross-sublane reduce
    # instead of a 1-wide MXU matmul; b2 is a scalar living in SMEM.
    y = jnp.sum(h * w2_ref[...], axis=0, keepdims=True) + b2_ref[0]  # (1, tile_n)
    return jax.nn.sigmoid(y)


def link_predictor_kernel(xi_ref, xj_ref,
                          w0_ref, b0_ref, w1_ref, b1_ref, w2_ref, b2_ref,
                          o_ref):
    """Two-stream inputs: x_i and x_j each (tile_n, C_in)."""
    x = xi_ref[...] * xj_ref[...]
    o_ref[...] = _mlp_tile(x, w0_ref, b0_ref, w1_ref, b1_ref, w2_ref, b2_ref)[None]


def link_predictor_packed_kernel(x_ref,
                                 w0_ref, b0_ref, w1_ref, b1_ref, w2_ref, b2_ref,
                                 o_ref):
    """Packed input: one (2, tile_n, C_in) block holding both node embeddings."""
    x = x_ref[0] * x_ref[1]
    o_ref[...] = _mlp_tile(x, w0_ref, b0_ref, w1_ref, b1_ref, w2_ref, b2_ref)[None]


# ----------------------------------------------------------------------------
# Tiling / VMEM-budget heuristics
# ----------------------------------------------------------------------------

def _device_kind():
    try:
        return jax.devices()[0].device_kind.lower()
    except Exception:
        return ""


def _default_max_tile():
    # v7x HBM is ~3.2 TB/s: need ~8192-row tiles for the per-step DMA to cover
    # the ~0.35 us grid-step overhead.  4096 already does it on v5e/v6e.
    return 8192 if "v7" in _device_kind() else 4096


def _pick_tile_n(n_rows, max_tile):
    """Batch tile: multiple of 128 (lane-dense output rows), as big as sensible
    to amortize the ~0.35 us per-grid-step overhead, but keep >= 2 grid steps
    when possible so ("parallel",) can shard the batch axis across cores."""
    t = max_tile
    while t > 128 and pl.cdiv(n_rows, t) < 2:
        t //= 2
    # v7x megacore: prefer an even grid so the two TensorCores load-balance
    # (only take the smaller tile if halving actually lands on an even grid).
    if "v7" in _device_kind() and t > 128:
        nt = pl.cdiv(n_rows, t)
        if nt > 1 and nt % 2 == 1 and pl.cdiv(n_rows, t // 2) % 2 == 0:
            t //= 2
    return t


def _vmem_limit_bytes(tile_n, c_in, h, in_itemsize, n_streams):
    """VMEM budget as a function of the actual tile/feature sizes (not a fixed
    32 MiB), with headroom, clamped so it always fits v7x's 64 MiB physical."""
    rup = lambda x, m: -(-x // m) * m
    lane_cin = rup(c_in, 128)
    # double-buffered, lane-padded x tiles
    in_bytes = n_streams * 2 * tile_n * lane_cin * in_itemsize
    # double-buffered (1, tile_n) f32 output tile (sublane-padded to 8)
    out_bytes = 2 * 8 * rup(tile_n, 128) * 4
    # VMEM-resident weights/biases (constant index maps -> single copy)
    w_bytes = (rup(h, 8) * lane_cin + rup(h, 8) * rup(h, 128)
               + 3 * rup(h, 8) * 128) * 4
    # live (H, tile_n) f32 intermediate activations (two at a time)
    act_bytes = 2 * rup(h, 8) * rup(tile_n, 128) * 4
    need = in_bytes + out_bytes + w_bytes + act_bytes
    # 1.5x headroom for compiler temporaries; 16 MiB floor; 48 MiB ceiling
    # (safe inside v7x's 64 MiB physical VMEM; v5e/v6e have 128 MiB).
    return int(min(max(need * 3 // 2, 16 << 20), 48 << 20))


# ----------------------------------------------------------------------------
# Wrappers
# ----------------------------------------------------------------------------

def _pack_params(params, matmul_dtype):
    """torch-layout params -> kernel layout (feature-major / column biases)."""
    H, _ = params["w0"].shape
    assert params["w2"].shape[0] == 1, "kernel is specialized to out_channels == 1"
    w0 = params["w0"].astype(matmul_dtype)                 # (H, C_in)
    w1 = params["w1"].astype(matmul_dtype)                 # (H, H)
    b0 = params["b0"].reshape(H, 1).astype(jnp.float32)    # (H, 1)
    b1 = params["b1"].reshape(H, 1).astype(jnp.float32)    # (H, 1)
    w2 = params["w2"].reshape(1, H).T.astype(jnp.float32)  # (H, 1) column
    b2 = params["b2"].reshape(1).astype(jnp.float32)       # (1,) scalar -> SMEM
    return w0, b0, w1, b1, w2, b2


def _run(kernel, data_inputs, data_spec_fns, params, N, C_in,
         tile_n, matmul_dtype, in_itemsize, n_streams):
    # TODO(synk): kernel is specialized to num_layers == 3 and out_channels == 1
    # (the standard OGB LinkPredictor config); dropout is identity (eval mode).
    H = params["w0"].shape[0]
    if tile_n is None:
        tile_n = _pick_tile_n(N, _default_max_tile())
    num_tiles = pl.cdiv(N, tile_n)   # tail tile is padded by Pallas; rows are
                                     # independent, so garbage tail lanes are
                                     # simply sliced off below (no masking).

    w0, b0, w1, b1, w2, b2 = _pack_params(params, matmul_dtype)

    const_map = lambda i: (0, 0)     # constant block index => fetched once,
                                     # VMEM-resident, no per-step re-DMA.
    weight_specs = [
        pl.BlockSpec((H, C_in), const_map),                      # w0 [out, in]
        pl.BlockSpec((H, 1), const_map),                         # b0 column
        pl.BlockSpec((H, H), const_map),                         # w1
        pl.BlockSpec((H, 1), const_map),                         # b1 column
        pl.BlockSpec((H, 1), const_map),                         # w2 column
        pl.BlockSpec(memory_space=pltpu.MemorySpace.SMEM),       # b2 scalar
    ]

    out_tiles = pl.pallas_call(
        kernel,
        # Lane-dense output: one row of tile_n logits per grid step, reshaped
        # back to (N, 1) outside the kernel (avoids C_out==1 masked stores).
        out_shape=jax.ShapeDtypeStruct((num_tiles, 1, tile_n), jnp.float32),
        grid_spec=pltpu.PrefetchScalarGridSpec(
            num_scalar_prefetch=0,
            grid=(num_tiles,),
            in_specs=[fn(tile_n) for fn in data_spec_fns] + weight_specs,
            out_specs=pl.BlockSpec((1, 1, tile_n), lambda i: (i, 0, 0)),
        ),
        compiler_params=pltpu.CompilerParams(
            dimension_semantics=("parallel",),
            vmem_limit_bytes=_vmem_limit_bytes(
                tile_n, C_in, H, in_itemsize, n_streams)),
    )(*data_inputs, w0, b0, w1, b1, w2, b2)

    return out_tiles.reshape(-1)[:N].reshape(N, 1)


def link_predictor(x_i, x_j, params, *, tile_n=None, matmul_dtype=jnp.bfloat16):
    """Two-stream API.  params hold torch-layout Linear weights: w* is
    [out, in], b* is [out].  x_i/x_j may be f32 or bf16 — bf16 inputs (cast by
    the producer, not here) halve the binding HBM read."""
    N, C_in = x_i.shape
    assert x_j.shape == (N, C_in)
    row_spec = lambda t: pl.BlockSpec((t, C_in), lambda i: (i, 0))
    return _run(link_predictor_kernel, (x_i, x_j), [row_spec, row_spec],
                params, N, C_in, tile_n, matmul_dtype,
                jnp.dtype(x_i.dtype).itemsize, n_streams=2)


def link_predictor_packed(x_pair, params, *, tile_n=None,
                          matmul_dtype=jnp.bfloat16):
    """Packed API: x_pair has shape (2, N, C_in) with x_pair[0]=x_i and
    x_pair[1]=x_j.  One DMA stream / pipeline buffer pair instead of two —
    use when the upstream edge-gather can emit this layout directly."""
    two, N, C_in = x_pair.shape
    assert two == 2
    pair_spec = lambda t: pl.BlockSpec((2, t, C_in), lambda i: (0, i, 0))
    return _run(link_predictor_packed_kernel, (x_pair,), [pair_spec],
                params, N, C_in, tile_n, matmul_dtype,
                jnp.dtype(x_pair.dtype).itemsize, n_streams=2)


# ----------------------------------------------------------------------------
# Reference / init / test
# ----------------------------------------------------------------------------

def init_params(key, in_channels, hidden_channels, out_channels):
    """torch.nn.Linear-style init: weight [out, in], bias [out],
    U(-1/sqrt(fan_in), 1/sqrt(fan_in)) like the default reset_parameters."""
    def lin(k, fan_in, fan_out):
        kw, kb = jax.random.split(k)
        bound = 1.0 / (fan_in ** 0.5)
        w = jax.random.uniform(kw, (fan_out, fan_in), jnp.float32, -bound, bound)
        b = jax.random.uniform(kb, (fan_out,), jnp.float32, -bound, bound)
        return w, b

    k0, k1, k2 = jax.random.split(key, 3)
    w0, b0 = lin(k0, in_channels, hidden_channels)
    w1, b1 = lin(k1, hidden_channels, hidden_channels)
    w2, b2 = lin(k2, hidden_channels, out_channels)
    return dict(w0=w0, b0=b0, w1=w1, b1=b1, w2=w2, b2=b2)


def reference(x_i, x_j, p):
    x = x_i * x_j
    x = jnp.maximum(x @ p["w0"].T + p["b0"], 0.0)
    x = jnp.maximum(x @ p["w1"].T + p["b1"], 0.0)
    return jax.nn.sigmoid(x @ p["w2"].T + p["b2"])


if __name__ == "__main__":
    # Small shapes: num_layers=3, in=32, hidden=32, out=1; 640 edges (not a
    # multiple of the chosen tile, so the pl.cdiv tail path is exercised).
    N, C_in, H, C_out = 640, 32, 32, 1
    key = jax.random.PRNGKey(0)
    k_xi, k_xj, k_p = jax.random.split(key, 3)

    x_i = jax.random.normal(k_xi, (N, C_in), jnp.float32)
    x_j = jax.random.normal(k_xj, (N, C_in), jnp.float32)
    params = init_params(k_p, C_in, H, C_out)

    ref = reference(x_i, x_j, params)

    # Two-stream path.
    out = jax.block_until_ready(link_predictor(x_i, x_j, params))
    assert out.shape == (N, C_out)
    # bf16 MXU operands with f32 accumulate; outputs are sigmoid-bounded, so an
    # absolute tolerance is the right check (matmul_dtype=float32 would pass 1e-5).
    err = float(jnp.max(jnp.abs(out - ref)))
    assert err < 5e-2, f"two-stream max abs err {err}"

    # Packed-layout path (stacked here only to validate correctness; in
    # production the upstream edge-gather writes this layout directly).
    x_pair = jnp.stack([x_i, x_j], axis=0)
    out_p = jax.block_until_ready(link_predictor_packed(x_pair, params))
    err_p = float(jnp.max(jnp.abs(out_p - ref)))
    assert err_p < 5e-2, f"packed max abs err {err_p}"

    print("KERNEL_OK")
</pallas_src>

<mosaic_0001>
module attributes {stable_mosaic.version = 11 : i64} {
  func.func @link_predictor_kernel(%arg0: i32, %arg1: memref<512x32xf32, #tpu.memory_space<vmem>>, %arg2: memref<512x32xf32, #tpu.memory_space<vmem>>, %arg3: memref<32x32xbf16, #tpu.memory_space<vmem>>, %arg4: memref<32x1xf32, #tpu.memory_space<vmem>>, %arg5: memref<32x32xbf16, #tpu.memory_space<vmem>>, %arg6: memref<32x1xf32, #tpu.memory_space<vmem>>, %arg7: memref<32x1xf32, #tpu.memory_space<vmem>>, %arg8: memref<1xf32, #tpu.memory_space<smem>>, %arg9: memref<1x1x512xf32, #tpu.memory_space<vmem>>) attributes {dimension_semantics = [#tpu.dimension_semantics<parallel>], iteration_bounds = array<i64: 2>, scalar_prefetch = 0 : i64, scratch_operands = 0 : i64, tpu.core_type = #tpu.core_type<tc>, window_params = [{transform_indices = @transform_0, window_bounds = array<i64: 512, 32>}, {transform_indices = @transform_1, window_bounds = array<i64: 512, 32>}, {pipeline_mode = #tpu.pipeline_mode<synchronous>, transform_indices = @transform_2, window_bounds = array<i64: 32, 32>}, {pipeline_mode = #tpu.pipeline_mode<synchronous>, transform_indices = @transform_3, window_bounds = array<i64: 32, 1>}, {pipeline_mode = #tpu.pipeline_mode<synchronous>, transform_indices = @transform_4, window_bounds = array<i64: 32, 32>}, {pipeline_mode = #tpu.pipeline_mode<synchronous>, transform_indices = @transform_5, window_bounds = array<i64: 32, 1>}, {pipeline_mode = #tpu.pipeline_mode<synchronous>, transform_indices = @transform_6, window_bounds = array<i64: 32, 1>}, {transform_indices = @transform_7, window_bounds = array<i64: 1>}, {transform_indices = @transform_8, window_bounds = array<i64: 1, 1, 512>}]} {
    %c0 = arith.constant 0 : index
    %c0_0 = arith.constant 0 : index
    %0 = vector.load %arg1[%c0, %c0_0] : memref<512x32xf32, #tpu.memory_space<vmem>>, vector<512x32xf32>
    %c0_1 = arith.constant 0 : index
    %c0_2 = arith.constant 0 : index
    %1 = vector.load %arg2[%c0_1, %c0_2] : memref<512x32xf32, #tpu.memory_space<vmem>>, vector<512x32xf32>
    %2 = arith.mulf %0, %1 : vector<512x32xf32>
    %c0_3 = arith.constant 0 : index
    %c0_4 = arith.constant 0 : index
    %3 = vector.load %arg3[%c0_3, %c0_4] : memref<32x32xbf16, #tpu.memory_space<vmem>>, vector<32x32xbf16>
    %4 = arith.truncf %2 : vector<512x32xf32> to vector<512x32xbf16>
    %cst = arith.constant dense<0.000000e+00> : vector<32x512xf32>
    %5 = tpu.matmul %3, %4, %cst {dimension_numbers = #tpu.dot_dimension_numbers<[1], [1], [0], [0], [0, 0, 1, 0], [], []>} : vector<32x32xbf16>, vector<512x32xbf16>, vector<32x512xf32> -> vector<32x512xf32>
    %c0_5 = arith.constant 0 : index
    %c0_6 = arith.constant 0 : index
    %6 = vector.load %arg4[%c0_5, %c0_6] : memref<32x1xf32, #tpu.memory_space<vmem>>, vector<32x1xf32>
    %7 = vector.broadcast %6 : vector<32x1xf32> to vector<32x512xf32>
    %8 = arith.addf %5, %7 : vector<32x512xf32>
    %cst_7 = arith.constant 0.000000e+00 : f32
    %9 = vector.broadcast %cst_7 : f32 to vector<32x512xf32>
    %10 = arith.maximumf %8, %9 : vector<32x512xf32>
    %c0_8 = arith.constant 0 : index
    %c0_9 = arith.constant 0 : index
    %11 = vector.load %arg5[%c0_8, %c0_9] : memref<32x32xbf16, #tpu.memory_space<vmem>>, vector<32x32xbf16>
    %12 = arith.truncf %10 : vector<32x512xf32> to vector<32x512xbf16>
    %cst_10 = arith.constant dense<0.000000e+00> : vector<32x512xf32>
    %13 = tpu.matmul %11, %12, %cst_10 {dimension_numbers = #tpu.dot_dimension_numbers<[1], [0], [0], [1], [0, 0, 1, 1], [], []>} : vector<32x32xbf16>, vector<32x512xbf16>, vector<32x512xf32> -> vector<32x512xf32>
    %c0_11 = arith.constant 0 : index
    %c0_12 = arith.constant 0 : index
    %14 = vector.load %arg6[%c0_11, %c0_12] : memref<32x1xf32, #tpu.memory_space<vmem>>, vector<32x1xf32>
    %15 = vector.broadcast %14 : vector<32x1xf32> to vector<32x512xf32>
    %16 = arith.addf %13, %15 : vector<32x512xf32>
    %cst_13 = arith.constant 0.000000e+00 : f32
    %17 = vector.broadcast %cst_13 : f32 to vector<32x512xf32>
    %18 = arith.maximumf %16, %17 : vector<32x512xf32>
    %c0_14 = arith.constant 0 : index
    %c0_15 = arith.constant 0 : index
    %19 = vector.load %arg7[%c0_14, %c0_15] : memref<32x1xf32, #tpu.memory_space<vmem>>, vector<32x1xf32>
    %20 = vector.broadcast %19 : vector<32x1xf32> to vector<32x512xf32>
    %21 = arith.mulf %18, %20 : vector<32x512xf32>
    %cst_16 = arith.constant dense<0.000000e+00> : vector<512xf32>
    %22 = vector.multi_reduction <add>, %21, %cst_16 [0] : vector<32x512xf32> to vector<512xf32>
    %23 = vector.shape_cast %22 : vector<512xf32> to vector<1x512xf32>
    %c0_17 = arith.constant 0 : index
    %24 = memref.load %arg8[%c0_17] : memref<1xf32, #tpu.memory_space<smem>>
    %25 = vector.broadcast %24 : f32 to vector<1x512xf32>
    %26 = arith.addf %23, %25 : vector<1x512xf32>
    %27 = arith.negf %26 : vector<1x512xf32>
    %28 = math.exp %27 : vector<1x512xf32>
    %cst_18 = arith.constant 1.000000e+00 : f32
    %29 = vector.broadcast %cst_18 : f32 to vector<1x512xf32>
    %30 = arith.addf %29, %28 : vector<1x512xf32>
    %31 = arith.divf %29, %30 : vector<1x512xf32>
    %32 = vector.shape_cast %31 : vector<1x512xf32> to vector<1x1x512xf32>
    %c0_19 = arith.constant 0 : index
    %c0_20 = arith.constant 0 : index
    %c0_21 = arith.constant 0 : index
    %33 = vector.load %arg9[%c0_19, %c0_20, %c0_21] : memref<1x1x512xf32, #tpu.memory_space<vmem>>, vector<1x1x512xf32>
    tpu.vector_store %arg9[%c0_19, %c0_20, %c0_21], %32 {strides = array<i32>} : memref<1x1x512xf32, #tpu.memory_space<vmem>>, vector<1x1x512xf32>,
    return
  }
  func.func @transform_0(%arg0: i32) -> (i32, i32) {
    %c0_i32 = arith.constant 0 : i32
    %c0_i32_0 = arith.constant 0 : i32
    return %arg0, %c0_i32 : i32, i32
  }
  func.func @transform_1(%arg0: i32) -> (i32, i32) {
    %c0_i32 = arith.constant 0 : i32
    %c0_i32_0 = arith.constant 0 : i32
    return %arg0, %c0_i32 : i32, i32
  }
  func.func @transform_2(%arg0: i32) -> (i32, i32) {
    %c0_i32 = arith.constant 0 : i32
    %c0_i32_0 = arith.constant 0 : i32
    %c0_i32_1 = arith.constant 0 : i32
    return %c0_i32, %c0_i32_0 : i32, i32
  }
  func.func @transform_3(%arg0: i32) -> (i32, i32) {
    %c0_i32 = arith.constant 0 : i32
    %c0_i32_0 = arith.constant 0 : i32
    %c0_i32_1 = arith.constant 0 : i32
    return %c0_i32, %c0_i32_0 : i32, i32
  }
  func.func @transform_4(%arg0: i32) -> (i32, i32) {
    %c0_i32 = arith.constant 0 : i32
    %c0_i32_0 = arith.constant 0 : i32
    %c0_i32_1 = arith.constant 0 : i32
    return %c0_i32, %c0_i32_0 : i32, i32
  }
  func.func @transform_5(%arg0: i32) -> (i32, i32) {
    %c0_i32 = arith.constant 0 : i32
    %c0_i32_0 = arith.constant 0 : i32
    %c0_i32_1 = arith.constant 0 : i32
    return %c0_i32, %c0_i32_0 : i32, i32
  }
  func.func @transform_6(%arg0: i32) -> (i32, i32) {
    %c0_i32 = arith.constant 0 : i32
    %c0_i32_0 = arith.constant 0 : i32
    %c0_i32_1 = arith.constant 0 : i32
    return %c0_i32, %c0_i32_0 : i32, i32
  }
  func.func @transform_7(%arg0: i32) -> i32 {
    %c0_i32 = arith.constant 0 : i32
    %c0_i32_0 = arith.constant 0 : i32
    return %c0_i32 : i32
  }
  func.func @transform_8(%arg0: i32) -> (i32, i32, i32) {
    %c0_i32 = arith.constant 0 : i32
    %c0_i32_0 = arith.constant 0 : i32
    %c0_i32_1 = arith.constant 0 : i32
    return %arg0, %c0_i32, %c0_i32_0 : i32, i32, i32
  }
}

</mosaic_0001>

<llo_original>
// kernel: tpu_custom_call.1
$region0: #{tpu_custom_call.1}
  #allocation0 [shape = 'u32[]', space=smem, size = 0x4, offset = 0x4, fixed_abs, tag = 'smem constant byte address 0x4 - core index']
  #allocation1 [shape = 'u32[144,128]{1,0:T(1,128)}', space=vmem, size = 0x12000, scoped, tag = 'internal scratch']
  #allocation2 [shape = 'f32[1]{0:T(128)S(6)}', space=smem, size = 0x200, scoped, tag = 'scoped memory for tpu_custom_call.1']
  %s0 = inlined_call_operand.vmem [shape: f32[640,32], index: 0, kind: input, shape index: {}]
  %s1 = inlined_call_operand.vmem [shape: f32[640,32], index: 1, kind: input, shape index: {}]
  %s2 = inlined_call_operand.vmem [shape: bf16[32,32], index: 2, kind: input, shape index: {}]
  %s3 = inlined_call_operand.vmem [shape: f32[32,1], index: 3, kind: input, shape index: {}]
  %s4 = inlined_call_operand.vmem [shape: bf16[32,32], index: 4, kind: input, shape index: {}]
  %s5 = inlined_call_operand.vmem [shape: f32[32,1], index: 5, kind: input, shape index: {}]
  %s6 = inlined_call_operand.vmem [shape: f32[32,1], index: 6, kind: input, shape index: {}]
  %s7 = inlined_call_operand.<no memory space> [shape: f32[1], index: 7, kind: input, shape index: {}]
  %s8 = inlined_call_operand.hbm [shape: f32[2,1,512], index: 8, kind: output, shape index: {}]
  %s9 = sld [smem:[#allocation0]]
  $region65: #{tpu_custom_call.1} parent=0
    _
  %s11 = ssub.s32 1, %s9
  %s12 = scalar_select 0, %s11, %s9
  %13 = sst [smem:[#allocation2]] %s7
  $region1: #{tpu_custom_call.1} parent=0
    #allocation3 [shape = 'u8[4096]{0}', space=vmem, size = 0x1000, scoped, tag = 'output window, operand 0']
    #allocation4 [shape = 's32[2]{0}', space=sflag, size = 0x8, scoped, tag = 'scoped memory for tpu_custom_call.1']
    %14 = vsyncpa [#allocation4], 0
    %s15 = scalar_lea.sflag [#allocation4], 1
    %16 = vsyncpa %s15, 0
    loop: start=0, step=1, limit=4
    $region2: #{tpu_custom_call.1} parent=1 // loop_pre_header
      _
    $region3: #{tpu_custom_call.1} parent=1 // loop_header
      %s18 = sphi 0, %s22
      %p19 = scmp.ge.s32.totalorder %s18, 4
      %s28 = sphi 0, %s30
      %s31 = sphi 0, %s28
      %s32 = sphi 0, %s31
      %s48 = sphi 0, %s32
      %s54 = sphi 0, %s56
      %s57 = sphi 0, %s54
      %s58 = sphi 0, %s57
      %s74 = sphi 0, %s58
      %s78 = sphi 0, %s78
      %s80 = sphi 0, %s78
      %s81 = sphi 0, %s80
      %s95 = sphi 0, %s81
      %s99 = sphi 0, %s99
      %s101 = sphi 0, %s99
      %s102 = sphi 0, %s101
      %s116 = sphi 0, %s102
      %s120 = sphi 0, %s120
      %s122 = sphi 0, %s120
      %s123 = sphi 0, %s122
      %s137 = sphi 0, %s123
      %s141 = sphi 0, %s141
      %s143 = sphi 0, %s141
      %s144 = sphi 0, %s143
      %s158 = sphi 0, %s144
      %s162 = sphi 0, %s162
      %s164 = sphi 0, %s162
      %s165 = sphi 0, %s164
      %s179 = sphi 0, %s165
      %s183 = sphi 0, %s183
      %s185 = sphi 0, %s183
      %s186 = sphi 0, %s185
      %s200 = sphi 0, %s186
      %s206 = sphi 0, %s208
      %s209 = sphi 0, %s206
      %s210 = sphi 0, %s209
      %s226 = sphi 0, %s210
    $region4: #{tpu_custom_call.1} parent=1 // loop_header_branch
      %21 = sbr.rel (%p19) target = $region8
    $region5: #{tpu_custom_call.1} parent=1 // loop_body
      %s23 = ssub.s32 %s18, 1
      %s24 = ssub.s32 %s18, 2
      %s25 = sadd.s32 %s18, 1
      %s26 = ssub.s32 %s18, %s25
      %p27 = scmp.eq.s32.totalorder %s26, 0
      %s29 = sadd.s32 %s28, 1
      %s30 = scalar_select %p27, %s28, %s29
      %p33 = pneg %p27
      %p34 = scmp.eq.s32.totalorder %s18, 1
      %p35 = por %p33, %p34
      %p36 = scmp.ne.s32.totalorder %s28, %s31
      %p37 = scmp.eq.s32.totalorder %s18, 0
      %p38 = por %p36, %p37
      %p39 = scmp.ne.s32.totalorder %s28, %s31
      %p40 = scmp.eq.s32.totalorder %s23, 1
      %p41 = por %p39, %p40
      %p42 = scmp.ne.s32.totalorder %s31, %s32
      %p43 = scmp.eq.s32.totalorder %s23, 0
      %p44 = por %p42, %p43
      %p45 = scmp.ne.s32.totalorder %s31, %s32
      %p46 = scmp.eq.s32.totalorder %s24, 1
      %p47 = por %p45, %p46
      %p49 = scmp.ne.s32.totalorder %s32, %s48
      %p50 = scmp.eq.s32.totalorder %s24, 0
      %p51 = por %p49, %p50
      %s52 = ssub.s32 %s18, %s25
      %p53 = scmp.eq.s32.totalorder %s52, 0
      %s55 = sadd.s32 %s54, 1
      %s56 = scalar_select %p53, %s54, %s55
      %p59 = pneg %p53
      %p60 = scmp.eq.s32.totalorder %s18, 1
      %p61 = por %p59, %p60
      %p62 = scmp.ne.s32.totalorder %s54, %s57
      %p63 = scmp.eq.s32.totalorder %s18, 0
      %p64 = por %p62, %p63
      %p65 = scmp.ne.s32.totalorder %s54, %s57
      %p66 = scmp.eq.s32.totalorder %s23, 1
      %p67 = por %p65, %p66
      %p68 = scmp.ne.s32.totalorder %s57, %s58
      %p69 = scmp.eq.s32.totalorder %s23, 0
      %p70 = por %p68, %p69
      %p71 = scmp.ne.s32.totalorder %s57, %s58
      %p72 = scmp.eq.s32.totalorder %s24, 1
      %p73 = por %p71, %p72
      %p75 = scmp.ne.s32.totalorder %s58, %s74
      %p76 = scmp.eq.s32.totalorder %s24, 0
      %p77 = por %p75, %p76
      %s79 = sadd.s32 %s78, 1
      %p82 = scmp.eq.s32.totalorder %s18, 1
      %p83 = scmp.ne.s32.totalorder %s78, %s80
      %p84 = scmp.eq.s32.totalorder %s18, 0
      %p85 = por %p83, %p84
      %p86 = scmp.ne.s32.totalorder %s78, %s80
      %p87 = scmp.eq.s32.totalorder %s23, 1
      %p88 = por %p86, %p87
      %p89 = scmp.ne.s32.totalorder %s80, %s81
      %p90 = scmp.eq.s32.totalorder %s23, 0
      %p91 = por %p89, %p90
      %p92 = scmp.ne.s32.totalorder %s80, %s81
      %p93 = scmp.eq.s32.totalorder %s24, 1
      %p94 = por %p92, %p93
      %p96 = scmp.ne.s32.totalorder %s81, %s95
      %p97 = scmp.eq.s32.totalorder %s24, 0
      %p98 = por %p96, %p97
      %s100 = sadd.s32 %s99, 1
      %p103 = scmp.eq.s32.totalorder %s18, 1
      %p104 = scmp.ne.s32.totalorder %s99, %s101
      %p105 = scmp.eq.s32.totalorder %s18, 0
      %p106 = por %p104, %p105
      %p107 = scmp.ne.s32.totalorder %s99, %s101
      %p108 = scmp.eq.s32.totalorder %s23, 1
      %p109 = por %p107, %p108
      %p110 = scmp.ne.s32.totalorder %s101, %s102
      %p111 = scmp.eq.s32.totalorder %s23, 0
      %p112 = por %p110, %p111
      %p113 = scmp.ne.s32.totalorder %s101, %s102
      %p114 = scmp.eq.s32.totalorder %s24, 1
      %p115 = por %p113, %p114
      %p117 = scmp.ne.s32.totalorder %s102, %s116
      %p118 = scmp.eq.s32.totalorder %s24, 0
      %p119 = por %p117, %p118
      %s121 = sadd.s32 %s120, 1
      %p124 = scmp.eq.s32.totalorder %s18, 1
      %p125 = scmp.ne.s32.totalorder %s120, %s122
      %p126 = scmp.eq.s32.totalorder %s18, 0
      %p127 = por %p125, %p126
      %p128 = scmp.ne.s32.totalorder %s120, %s122
      %p129 = scmp.eq.s32.totalorder %s23, 1
      %p130 = por %p128, %p129
      %p131 = scmp.ne.s32.totalorder %s122, %s123
      %p132 = scmp.eq.s32.totalorder %s23, 0
      %p133 = por %p131, %p132
      %p134 = scmp.ne.s32.totalorder %s122, %s123
      %p135 = scmp.eq.s32.totalorder %s24, 1
      %p136 = por %p134, %p135
      %p138 = scmp.ne.s32.totalorder %s123, %s137
      %p139 = scmp.eq.s32.totalorder %s24, 0
      %p140 = por %p138, %p139
      %s142 = sadd.s32 %s141, 1
      %p145 = scmp.eq.s32.totalorder %s18, 1
      %p146 = scmp.ne.s32.totalorder %s141, %s143
      %p147 = scmp.eq.s32.totalorder %s18, 0
      %p148 = por %p146, %p147
      %p149 = scmp.ne.s32.totalorder %s141, %s143
      %p150 = scmp.eq.s32.totalorder %s23, 1
      %p151 = por %p149, %p150
      %p152 = scmp.ne.s32.totalorder %s143, %s144
      %p153 = scmp.eq.s32.totalorder %s23, 0
      %p154 = por %p152, %p153
      %p155 = scmp.ne.s32.totalorder %s143, %s144
      %p156 = scmp.eq.s32.totalorder %s24, 1
      %p157 = por %p155, %p156
      %p159 = scmp.ne.s32.totalorder %s144, %s158
      %p160 = scmp.eq.s32.totalorder %s24, 0
      %p161 = por %p159, %p160
      %s163 = sadd.s32 %s162, 1
      %p166 = scmp.eq.s32.totalorder %s18, 1
      %p167 = scmp.ne.s32.totalorder %s162, %s164
      %p168 = scmp.eq.s32.totalorder %s18, 0
      %p169 = por %p167, %p168
      %p170 = scmp.ne.s32.totalorder %s162, %s164
      %p171 = scmp.eq.s32.totalorder %s23, 1
      %p172 = por %p170, %p171
      %p173 = scmp.ne.s32.totalorder %s164, %s165
      %p174 = scmp.eq.s32.totalorder %s23, 0
      %p175 = por %p173, %p174
      %p176 = scmp.ne.s32.totalorder %s164, %s165
      %p177 = scmp.eq.s32.totalorder %s24, 1
      %p178 = por %p176, %p177
      %p180 = scmp.ne.s32.totalorder %s165, %s179
      %p181 = scmp.eq.s32.totalorder %s24, 0
      %p182 = por %p180, %p181
      %s184 = sadd.s32 %s183, 1
      %p187 = scmp.eq.s32.totalorder %s18, 1
      %p188 = scmp.ne.s32.totalorder %s183, %s185
      %p189 = scmp.eq.s32.totalorder %s18, 0
      %p190 = por %p188, %p189
      %p191 = scmp.ne.s32.totalorder %s183, %s185
      %p192 = scmp.eq.s32.totalorder %s23, 1
      %p193 = por %p191, %p192
      %p194 = scmp.ne.s32.totalorder %s185, %s186
      %p195 = scmp.eq.s32.totalorder %s23, 0
      %p196 = por %p194, %p195
      %p197 = scmp.ne.s32.totalorder %s185, %s186
      %p198 = scmp.eq.s32.totalorder %s24, 1
      %p199 = por %p197, %p198
      %p201 = scmp.ne.s32.totalorder %s186, %s200
      %p202 = scmp.eq.s32.totalorder %s24, 0
      %p203 = por %p201, %p202
      %s204 = ssub.s32 %s18, %s25
      %p205 = scmp.eq.s32.totalorder %s204, 0
      %s207 = sadd.s32 %s206, 1
      %s208 = scalar_select %p205, %s206, %s207
      %p211 = pneg %p205
      %p212 = scmp.eq.s32.totalorder %s18, 1
      %p213 = por %p211, %p212
      %p214 = scmp.ne.s32.totalorder %s206, %s209
      %p215 = scmp.eq.s32.totalorder %s18, 0
      %p216 = por %p214, %p215
      %p217 = scmp.ne.s32.totalorder %s206, %s209
      %p218 = scmp.eq.s32.totalorder %s23, 1
      %p219 = por %p217, %p218
      %p220 = scmp.ne.s32.totalorder %s209, %s210
      %p221 = scmp.eq.s32.totalorder %s23, 0
      %p222 = por %p220, %p221
      %p223 = scmp.ne.s32.totalorder %s209, %s210
      %p224 = scmp.eq.s32.totalorder %s24, 1
      %p225 = por %p223, %p224
      %p227 = scmp.ne.s32.totalorder %s210, %s226
      %p228 = scmp.eq.s32.totalorder %s24, 0
      %p229 = por %p227, %p228
      %p230 = scmp.le.s32.totalorder 1, %s18
      %p231 = scmp.lt.s32.totalorder %s18, 3
      %p232 = pnand %p230, %p231
      %p233 = pneg %p232
      // Predicated region
      $region9: #{tpu_custom_call.1} parent=5 // pred_check
        _
      $region10: #{tpu_custom_call.1} parent=5 // pred_check_branch
        %235 = sbr.rel (%p232) target = $region12
      $region11: #{tpu_custom_call.1} parent=5 // pred_region
        %s236 = ssub.s32 %s18, 1
        // Predicated region
        $region13: #{tpu_custom_call.1} parent=11 // pred_check
          %p237 = pneg %p91
        $region14: #{tpu_custom_call.1} parent=11 // pred_check_branch
          %239 = sbr.rel (%p237) target = $region16
        $region15: #{tpu_custom_call.1} parent=11 // pred_region
          _
        $region16: #{tpu_custom_call.1} parent=11 // pred_fallthru
          _
        // Predicated region
        $region17: #{tpu_custom_call.1} parent=11 // pred_check
          %p240 = pneg %p112
        $region18: #{tpu_custom_call.1} parent=11 // pred_check_branch
          %242 = sbr.rel (%p240) target = $region20
        $region19: #{tpu_custom_call.1} parent=11 // pred_region
          _
        $region20: #{tpu_custom_call.1} parent=11 // pred_fallthru
          _
        // Predicated region
        $region21: #{tpu_custom_call.1} parent=11 // pred_check
          %p243 = pneg %p133
        $region22: #{tpu_custom_call.1} parent=11 // pred_check_branch
          %245 = sbr.rel (%p243) target = $region24
        $region23: #{tpu_custom_call.1} parent=11 // pred_region
          _
        $region24: #{tpu_custom_call.1} parent=11 // pred_fallthru
          _
        // Predicated region
        $region25: #{tpu_custom_call.1} parent=11 // pred_check
          %p246 = pneg %p154
        $region26: #{tpu_custom_call.1} parent=11 // pred_check_branch
          %248 = sbr.rel (%p246) target = $region28
        $region27: #{tpu_custom_call.1} parent=11 // pred_region
          _
        $region28: #{tpu_custom_call.1} parent=11 // pred_fallthru
          _
        // Predicated region
        $region29: #{tpu_custom_call.1} parent=11 // pred_check
          %p249 = pneg %p175
        $region30: #{tpu_custom_call.1} parent=11 // pred_check_branch
          %251 = sbr.rel (%p249) target = $region32
        $region31: #{tpu_custom_call.1} parent=11 // pred_region
          _
        $region32: #{tpu_custom_call.1} parent=11 // pred_fallthru
          _
        // Predicated region
        $region33: #{tpu_custom_call.1} parent=11 // pred_check
          %p252 = pneg %p196
        $region34: #{tpu_custom_call.1} parent=11 // pred_check_branch
          %254 = sbr.rel (%p252) target = $region36
        $region35: #{tpu_custom_call.1} parent=11 // pred_region
          _
        $region36: #{tpu_custom_call.1} parent=11 // pred_fallthru
          _
      $region12: #{tpu_custom_call.1} parent=5 // pred_fallthru
        _
      %p255 = scmp.lt.s32.totalorder %s18, 2
      // Predicated region
      $region37: #{tpu_custom_call.1} parent=5 // pred_check
        %p256 = pneg %p255
      $region38: #{tpu_custom_call.1} parent=5 // pred_check_branch
        %258 = sbr.rel (%p256) target = $region40
      $region39: #{tpu_custom_call.1} parent=5 // pred_region
        // Predicated region
        $region41: #{tpu_custom_call.1} parent=39 // pred_check
          %p259 = pneg %p38
        $region42: #{tpu_custom_call.1} parent=39 // pred_check_branch
          %261 = sbr.rel (%p259) target = $region44
        $region43: #{tpu_custom_call.1} parent=39 // pred_region
          %s262 = smul.u32 64, %s18
          %s263 = ssub.s32 80, %s262
          %p264 = scmp.lt.s32.totalorder %s263, 64
          %s265 = scalar_select %p264, %s263, 64
          %s266 = smul.u32 128, %s265
          %p267 = scmp.lt.s32.totalorder %s262, 79
          %s268 = scalar_select %p267, %s262, 79
          %s269 = smul.addr %s268, 8
          %s270 = scalar_lea.vmem %s0, %s269
          %s271 = smul.u32 64, %s18
          %s272 = ssub.s32 80, %s271
          %p273 = scmp.lt.s32.totalorder %s272, 64
          %s274 = scalar_select %p273, %s272, 64
          %s275 = smul.u32 128, %s274
        $region44: #{tpu_custom_call.1} parent=39 // pred_fallthru
          _
        // Predicated region
        $region45: #{tpu_custom_call.1} parent=39 // pred_check
          %p276 = pneg %p64
        $region46: #{tpu_custom_call.1} parent=39 // pred_check_branch
          %278 = sbr.rel (%p276) target = $region48
        $region47: #{tpu_custom_call.1} parent=39 // pred_region
          %s279 = smul.u32 64, %s18
          %s280 = ssub.s32 80, %s279
          %p281 = scmp.lt.s32.totalorder %s280, 64
          %s282 = scalar_select %p281, %s280, 64
          %s283 = smul.u32 128, %s282
          %p284 = scmp.lt.s32.totalorder %s279, 79
          %s285 = scalar_select %p284, %s279, 79
          %s286 = smul.addr %s285, 8
          %s287 = scalar_lea.vmem %s1, %s286
          %s288 = smul.u32 64, %s18
          %s289 = ssub.s32 80, %s288
          %p290 = scmp.lt.s32.totalorder %s289, 64
          %s291 = scalar_select %p290, %s289, 64
          %s292 = smul.u32 128, %s291
        $region48: #{tpu_custom_call.1} parent=39 // pred_fallthru
          _
      $region40: #{tpu_custom_call.1} parent=5 // pred_fallthru
        _
      %p293 = scmp.le.s32.totalorder 1, %s18
      %p294 = scmp.lt.s32.totalorder %s18, 3
      %p295 = pnand %p293, %p294
      %p296 = pneg %p295
      // Predicated region
      $region49: #{tpu_custom_call.1} parent=5 // pred_check
        _
      $region50: #{tpu_custom_call.1} parent=5 // pred_check_branch
        %298 = sbr.rel (%p295) target = $region52
      $region51: #{tpu_custom_call.1} parent=5 // pred_region
        %s299 = ssub.s32 %s18, 1
        %s300 = smul.u32 64, %s23
        %s301 = ssub.s32 80, %s300
        %p302 = scmp.lt.s32.totalorder %s301, 64
        %s303 = scalar_select %p302, %s301, 64
        %s304 = smul.u32 128, %s303
        %p305 = scmp.lt.s32.totalorder %s300, 79
        %s306 = scalar_select %p305, %s300, 79
        %s307 = smul.addr %s306, 8
        %s308 = scalar_lea.vmem %s0, %s307
        %p309 = pneg %p44
        %p310 = pneg %p41
        %s311 = smul.u32 64, %s23
        %s312 = ssub.s32 80, %s311
        %p313 = scmp.lt.s32.totalorder %s312, 64
        %s314 = scalar_select %p313, %s312, 64
        %s315 = smul.u32 128, %s314
        %p316 = scmp.lt.s32.totalorder %s311, 79
        %s317 = scalar_select %p316, %s311, 79
        %s318 = smul.addr %s317, 8
        %s319 = scalar_lea.vmem %s1, %s318
        %p320 = pneg %p70
        %p321 = pneg %p67
        %p322 = pneg %p91
        %p323 = pneg %p88
        %p324 = pneg %p112
        %p325 = pneg %p109
        %p326 = pneg %p133
        %p327 = pneg %p130
        %p328 = pneg %p154
        %p329 = pneg %p151
        %p330 = pneg %p175
        %p331 = pneg %p172
        %p332 = pneg %p196
        %p333 = pneg %p193
        %p334 = pneg %p222
        %p335 = pneg %p219
        %s336 = sand.u32 %s209, 1
        %s337 = scalar_lea.sflag [#allocation4], %s336
        %s338 = sand.u32 %s209, 1
        %s339 = smul.addr %s338, 4
        %s340 = scalar_lea.vmem [#allocation3], %s339
        %s341 = smul.u32 64, %s23
        %s342 = ssub.s32 80, %s341
        %p343 = scmp.lt.s32.totalorder %s342, 64
        %s344 = scalar_select %p343, %s342, 64
        %s345 = smul.u32 128, %s344
        %p346 = scmp.lt.s32.totalorder %s341, 79
        %s347 = scalar_select %p346, %s341, 79
        %s348 = smul.addr %s347, 8
        %s349 = scalar_lea.vmem %s0, %s348
        %s350 = smul.u32 64, %s23
        %s351 = ssub.s32 80, %s350
        %p352 = scmp.lt.s32.totalorder %s351, 64
        %s353 = scalar_select %p352, %s351, 64
        %s354 = smul.u32 128, %s353
        %s355 = smul.u32 64, %s23
        %s356 = ssub.s32 80, %s355
        %p357 = scmp.lt.s32.totalorder %s356, 64
        %s358 = scalar_select %p357, %s356, 64
        %s359 = smul.u32 128, %s358
        %p360 = scmp.lt.s32.totalorder %s355, 79
        %s361 = scalar_select %p360, %s355, 79
        %s362 = smul.addr %s361, 8
        %s363 = scalar_lea.vmem %s1, %s362
        %s364 = smul.u32 64, %s23
        %s365 = ssub.s32 80, %s364
        %p366 = scmp.lt.s32.totalorder %s365, 64
        %s367 = scalar_select %p366, %s365, 64
        %s368 = smul.u32 128, %s367
        %v370 = vld [vmem:[%s349] sm:$0xff]
        %v371 = vld [vmem:[%s349 + $0x8] sm:$0xff]
        %v372 = vld [vmem:[%s349 + $0x10] sm:$0xff]
        %v373 = vld [vmem:[%s349 + $0x18] sm:$0xff]
        %v374 = vld [vmem:[%s349 + $0x20] sm:$0xff]
        %v375 = vld [vmem:[%s349 + $0x28] sm:$0xff]
        %v376 = vld [vmem:[%s349 + $0x30] sm:$0xff]
        %v377 = vld [vmem:[%s349 + $0x38] sm:$0xff]
        %v378 = vld [vmem:[%s349 + $0x40] sm:$0xff]
        %v379 = vld [vmem:[%s349 + $0x48] sm:$0xff]
        %v380 = vld [vmem:[%s349 + $0x50] sm:$0xff]
        %v381 = vld [vmem:[%s349 + $0x58] sm:$0xff]
        %v382 = vld [vmem:[%s349 + $0x60] sm:$0xff]
        %v383 = vld [vmem:[%s349 + $0x68] sm:$0xff]
        %v384 = vld [vmem:[%s349 + $0x70] sm:$0xff]
        %v385 = vld [vmem:[%s349 + $0x78] sm:$0xff]
        %v386 = vld [vmem:[%s349 + $0x80] sm:$0xff]
        %v387 = vld [vmem:[%s349 + $0x88] sm:$0xff]
        %v388 = vld [vmem:[%s349 + $0x90] sm:$0xff]
        %v389 = vld [vmem:[%s349 + $0x98] sm:$0xff]
        %v390 = vld [vmem:[%s349 + $0xa0] sm:$0xff]
        %v391 = vld [vmem:[%s349 + $0xa8] sm:$0xff]
        %v392 = vld [vmem:[%s349 + $0xb0] sm:$0xff]
        %v393 = vld [vmem:[%s349 + $0xb8] sm:$0xff]
        %v394 = vld [vmem:[%s349 + $0xc0] sm:$0xff]
        %v395 = vld [vmem:[%s349 + $0xc8] sm:$0xff]
        %v396 = vld [vmem:[%s349 + $0xd0] sm:$0xff]
        %v397 = vld [vmem:[%s349 + $0xd8] sm:$0xff]
        %v398 = vld [vmem:[%s349 + $0xe0] sm:$0xff]
        %v399 = vld [vmem:[%s349 + $0xe8] sm:$0xff]
        %v400 = vld [vmem:[%s349 + $0xf0] sm:$0xff]
        %v401 = vld [vmem:[%s349 + $0xf8] sm:$0xff]
        %v402 = vld [vmem:[%s349 + $0x100] sm:$0xff]
        %v403 = vld [vmem:[%s349 + $0x108] sm:$0xff]
        %v404 = vld [vmem:[%s349 + $0x110] sm:$0xff]
        %v405 = vld [vmem:[%s349 + $0x118] sm:$0xff]
        %v406 = vld [vmem:[%s349 + $0x120] sm:$0xff]
        %v407 = vld [vmem:[%s349 + $0x128] sm:$0xff]
        %v408 = vld [vmem:[%s349 + $0x130] sm:$0xff]
        %v409 = vld [vmem:[%s349 + $0x138] sm:$0xff]
        %v410 = vld [vmem:[%s349 + $0x140] sm:$0xff]
        %v411 = vld [vmem:[%s349 + $0x148] sm:$0xff]
        %v412 = vld [vmem:[%s349 + $0x150] sm:$0xff]
        %v413 = vld [vmem:[%s349 + $0x158] sm:$0xff]
        %v414 = vld [vmem:[%s349 + $0x160] sm:$0xff]
        %v415 = vld [vmem:[%s349 + $0x168] sm:$0xff]
        %v416 = vld [vmem:[%s349 + $0x170] sm:$0xff]
        %v417 = vld [vmem:[%s349 + $0x178] sm:$0xff]
        %v418 = vld [vmem:[%s349 + $0x180] sm:$0xff]
        %v419 = vld [vmem:[%s349 + $0x188] sm:$0xff]
        %v420 = vld [vmem:[%s349 + $0x190] sm:$0xff]
        %v421 = vld [vmem:[%s349 + $0x198] sm:$0xff]
        %v422 = vld [vmem:[%s349 + $0x1a0] sm:$0xff]
        %v423 = vld [vmem:[%s349 + $0x1a8] sm:$0xff]
        %v424 = vld [vmem:[%s349 + $0x1b0] sm:$0xff]
        %v425 = vld [vmem:[%s349 + $0x1b8] sm:$0xff]
        %v426 = vld [vmem:[%s349 + $0x1c0] sm:$0xff]
        %v427 = vld [vmem:[%s349 + $0x1c8] sm:$0xff]
        %v428 = vld [vmem:[%s349 + $0x1d0] sm:$0xff]
        %v429 = vld [vmem:[%s349 + $0x1d8] sm:$0xff]
        %v430 = vld [vmem:[%s349 + $0x1e0] sm:$0xff]
        %v431 = vld [vmem:[%s349 + $0x1e8] sm:$0xff]
        %v432 = vld [vmem:[%s349 + $0x1f0] sm:$0xff]
        %v433 = vld [vmem:[%s349 + $0x1f8] sm:$0xff]
        %v434 = vld [vmem:[%s363] sm:$0xff]
        %v435 = vld [vmem:[%s363 + $0x8] sm:$0xff]
        %v436 = vld [vmem:[%s363 + $0x10] sm:$0xff]
        %v437 = vld [vmem:[%s363 + $0x18] sm:$0xff]
        %v438 = vld [vmem:[%s363 + $0x20] sm:$0xff]
        %v439 = vld [vmem:[%s363 + $0x28] sm:$0xff]
        %v440 = vld [vmem:[%s363 + $0x30] sm:$0xff]
        %v441 = vld [vmem:[%s363 + $0x38] sm:$0xff]
        %v442 = vld [vmem:[%s363 + $0x40] sm:$0xff]
        %v443 = vld [vmem:[%s363 + $0x48] sm:$0xff]
        %v444 = vld [vmem:[%s363 + $0x50] sm:$0xff]
        %v445 = vld [vmem:[%s363 + $0x58] sm:$0xff]
        %v446 = vld [vmem:[%s363 + $0x60] sm:$0xff]
        %v447 = vld [vmem:[%s363 + $0x68] sm:$0xff]
        %v448 = vld [vmem:[%s363 + $0x70] sm:$0xff]
        %v449 = vld [vmem:[%s363 + $0x78] sm:$0xff]
        %v450 = vld [vmem:[%s363 + $0x80] sm:$0xff]
        %v451 = vld [vmem:[%s363 + $0x88] sm:$0xff]
        %v452 = vld [vmem:[%s363 + $0x90] sm:$0xff]
        %v453 = vld [vmem:[%s363 + $0x98] sm:$0xff]
        %v454 = vld [vmem:[%s363 + $0xa0] sm:$0xff]
        %v455 = vld [vmem:[%s363 + $0xa8] sm:$0xff]
        %v456 = vld [vmem:[%s363 + $0xb0] sm:$0xff]
        %v457 = vld [vmem:[%s363 + $0xb8] sm:$0xff]
        %v458 = vld [vmem:[%s363 + $0xc0] sm:$0xff]
        %v459 = vld [vmem:[%s363 + $0xc8] sm:$0xff]
        %v460 = vld [vmem:[%s363 + $0xd0] sm:$0xff]
        %v461 = vld [vmem:[%s363 + $0xd8] sm:$0xff]
        %v462 = vld [vmem:[%s363 + $0xe0] sm:$0xff]
        %v463 = vld [vmem:[%s363 + $0xe8] sm:$0xff]
        %v464 = vld [vmem:[%s363 + $0xf0] sm:$0xff]
        %v465 = vld [vmem:[%s363 + $0xf8] sm:$0xff]
        %v466 = vld [vmem:[%s363 + $0x100] sm:$0xff]
        %v467 = vld [vmem:[%s363 + $0x108] sm:$0xff]
        %v468 = vld [vmem:[%s363 + $0x110] sm:$0xff]
        %v469 = vld [vmem:[%s363 + $0x118] sm:$0xff]
        %v470 = vld [vmem:[%s363 + $0x120] sm:$0xff]
        %v471 = vld [vmem:[%s363 + $0x128] sm:$0xff]
        %v472 = vld [vmem:[%s363 + $0x130] sm:$0xff]
        %v473 = vld [vmem:[%s363 + $0x138] sm:$0xff]
        %v474 = vld [vmem:[%s363 + $0x140] sm:$0xff]
        %v475 = vld [vmem:[%s363 + $0x148] sm:$0xff]
        %v476 = vld [vmem:[%s363 + $0x150] sm:$0xff]
        %v477 = vld [vmem:[%s363 + $0x158] sm:$0xff]
        %v478 = vld [vmem:[%s363 + $0x160] sm:$0xff]
        %v479 = vld [vmem:[%s363 + $0x168] sm:$0xff]
        %v480 = vld [vmem:[%s363 + $0x170] sm:$0xff]
        %v481 = vld [vmem:[%s363 + $0x178] sm:$0xff]
        %v482 = vld [vmem:[%s363 + $0x180] sm:$0xff]
        %v483 = vld [vmem:[%s363 + $0x188] sm:$0xff]
        %v484 = vld [vmem:[%s363 + $0x190] sm:$0xff]
        %v485 = vld [vmem:[%s363 + $0x198] sm:$0xff]
        %v486 = vld [vmem:[%s363 + $0x1a0] sm:$0xff]
        %v487 = vld [vmem:[%s363 + $0x1a8] sm:$0xff]
        %v488 = vld [vmem:[%s363 + $0x1b0] sm:$0xff]
        %v489 = vld [vmem:[%s363 + $0x1b8] sm:$0xff]
        %v490 = vld [vmem:[%s363 + $0x1c0] sm:$0xff]
        %v491 = vld [vmem:[%s363 + $0x1c8] sm:$0xff]
        %v492 = vld [vmem:[%s363 + $0x1d0] sm:$0xff]
        %v493 = vld [vmem:[%s363 + $0x1d8] sm:$0xff]
        %v494 = vld [vmem:[%s363 + $0x1e0] sm:$0xff]
        %v495 = vld [vmem:[%s363 + $0x1e8] sm:$0xff]
        %v496 = vld [vmem:[%s363 + $0x1f0] sm:$0xff]
        %v497 = vld [vmem:[%s363 + $0x1f8] sm:$0xff]
        %v498 = vmul.f32 %v370, %v434
        %v499 = vmul.f32 %v371, %v435
        %v500 = vmul.f32 %v372, %v436
        %v501 = vmul.f32 %v373, %v437
        %v502 = vmul.f32 %v374, %v438
        %v503 = vmul.f32 %v375, %v439
        %v504 = vmul.f32 %v376, %v440
        %v505 = vmul.f32 %v377, %v441
        %v506 = vmul.f32 %v378, %v442
        %v507 = vmul.f32 %v379, %v443
        %v508 = vmul.f32 %v380, %v444
        %v509 = vmul.f32 %v381, %v445
        %v510 = vmul.f32 %v382, %v446
        %v511 = vmul.f32 %v383, %v447
        %v512 = vmul.f32 %v384, %v448
        %v513 = vmul.f32 %v385, %v449
        %v514 = vmul.f32 %v386, %v450
        %v515 = vmul.f32 %v387, %v451
        %v516 = vmul.f32 %v388, %v452
        %v517 = vmul.f32 %v389, %v453
        %v518 = vmul.f32 %v390, %v454
        %v519 = vmul.f32 %v391, %v455
        %v520 = vmul.f32 %v392, %v456
        %v521 = vmul.f32 %v393, %v457
        %v522 = vmul.f32 %v394, %v458
        %v523 = vmul.f32 %v395, %v459
        %v524 = vmul.f32 %v396, %v460
        %v525 = vmul.f32 %v397, %v461
        %v526 = vmul.f32 %v398, %v462
        %v527 = vmul.f32 %v399, %v463
        %v528 = vmul.f32 %v400, %v464
        %v529 = vmul.f32 %v401, %v465
        %v530 = vmul.f32 %v402, %v466
        %v531 = vmul.f32 %v403, %v467
        %v532 = vmul.f32 %v404, %v468
        %v533 = vmul.f32 %v405, %v469
        %v534 = vmul.f32 %v406, %v470
        %v535 = vmul.f32 %v407, %v471
        %v536 = vmul.f32 %v408, %v472
        %v537 = vmul.f32 %v409, %v473
        %v538 = vmul.f32 %v410, %v474
        %v539 = vmul.f32 %v411, %v475
        %v540 = vmul.f32 %v412, %v476
        %v541 = vmul.f32 %v413, %v477
        %v542 = vmul.f32 %v414, %v478
        %v543 = vmul.f32 %v415, %v479
        %v544 = vmul.f32 %v416, %v480
        %v545 = vmul.f32 %v417, %v481
        %v546 = vmul.f32 %v418, %v482
        %v547 = vmul.f32 %v419, %v483
        %v548 = vmul.f32 %v420, %v484
        %v549 = vmul.f32 %v421, %v485
        %v550 = vmul.f32 %v422, %v486
        %v551 = vmul.f32 %v423, %v487
        %v552 = vmul.f32 %v424, %v488
        %v553 = vmul.f32 %v425, %v489
        %v554 = vmul.f32 %v426, %v490
        %v555 = vmul.f32 %v427, %v491
        %v556 = vmul.f32 %v428, %v492
        %v557 = vmul.f32 %v429, %v493
        %v558 = vmul.f32 %v430, %v494
        %v559 = vmul.f32 %v431, %v495
        %v560 = vmul.f32 %v432, %v496
        %v561 = vmul.f32 %v433, %v497
        %v562 = vld [vmem:[%s2] sm:$0xf]
        %v563 = vld [vmem:[%s2 + $0x4] sm:$0xf]
        %v564 = vld [vmem:[%s2 + $0x8] sm:$0xf]
        %v565 = vld [vmem:[%s2 + $0xc] sm:$0xf]
        %v566 = vpack.c.bf16 %v499, %v498
        %v567 = vpack.c.bf16 %v501, %v500
        %v568 = vpack.c.bf16 %v503, %v502
        %v569 = vpack.c.bf16 %v505, %v504
        %v570 = vpack.c.bf16 %v507, %v506
        %v571 = vpack.c.bf16 %v509, %v508
        %v572 = vpack.c.bf16 %v511, %v510
        %v573 = vpack.c.bf16 %v513, %v512
        %v574 = vpack.c.bf16 %v515, %v514
        %v575 = vpack.c.bf16 %v517, %v516
        %v576 = vpack.c.bf16 %v519, %v518
        %v577 = vpack.c.bf16 %v521, %v520
        %v578 = vpack.c.bf16 %v523, %v522
        %v579 = vpack.c.bf16 %v525, %v524
        %v580 = vpack.c.bf16 %v527, %v526
        %v581 = vpack.c.bf16 %v529, %v528
        %v582 = vpack.c.bf16 %v531, %v530
        %v583 = vpack.c.bf16 %v533, %v532
        %v584 = vpack.c.bf16 %v535, %v534
        %v585 = vpack.c.bf16 %v537, %v536
        %v586 = vpack.c.bf16 %v539, %v538
        %v587 = vpack.c.bf16 %v541, %v540
        %v588 = vpack.c.bf16 %v543, %v542
        %v589 = vpack.c.bf16 %v545, %v544
        %v590 = vpack.c.bf16 %v547, %v546
        %v591 = vpack.c.bf16 %v549, %v548
        %v592 = vpack.c.bf16 %v551, %v550
        %v593 = vpack.c.bf16 %v553, %v552
        %v594 = vpack.c.bf16 %v555, %v554
        %v595 = vpack.c.bf16 %v557, %v556
        %v596 = vpack.c.bf16 %v559, %v558
        %v597 = vpack.c.bf16 %v561, %v560
        %v598 = vld [vmem:[%s3] sm:$0xff]
        %v599 = vld [vmem:[%s3 + $0x8] sm:$0xff]
        %v600 = vld [vmem:[%s3 + $0x10] sm:$0xff]
        %v601 = vld [vmem:[%s3 + $0x18] sm:$0xff]
        %603 = vset.pattern.permute.xlu0 0
        %604 = vperm.xlu0 %603, %v598
        %v605 = vpop.permute.xlu0 %604
        %608 = vset.pattern.permute.xlu0 0
        %609 = vperm.xlu0 %608, %v599
        %v610 = vpop.permute.xlu0 %609
        %613 = vset.pattern.permute.xlu0 0
        %614 = vperm.xlu0 %613, %v600
        %v615 = vpop.permute.xlu0 %614
        %618 = vset.pattern.permute.xlu0 0
        %619 = vperm.xlu0 %618, %v601
        %v620 = vpop.permute.xlu0 %619
        %v626 = vunpack.c.l.b16 %v562
        %v627 = vunpack.c.l.b16 %v563
        %v628 = vunpack.c.l.b16 %v564
        %v629 = vunpack.c.l.b16 %v565
        %v630 = vpack.c.b16 %v627, %v626
        %v631 = vpack.c.b16 %v629, %v628
        %vm632 = vcmask 261120
        %v634 = vsel %vm632, %v630, 0
        %v637 = vsel %vm632, %v631, 0
        %v640 = vsel %vm632, %v566, 0
        %v643 = vsel %vm632, %v567, 0
        %v646 = vsel %vm632, %v568, 0
        %v649 = vsel %vm632, %v569, 0
        %v652 = vsel %vm632, %v570, 0
        %v655 = vsel %vm632, %v571, 0
        %v658 = vsel %vm632, %v572, 0
        %v661 = vsel %vm632, %v573, 0
        %v664 = vsel %vm632, %v574, 0
        %v667 = vsel %vm632, %v575, 0
        %v670 = vsel %vm632, %v576, 0
        %v673 = vsel %vm632, %v577, 0
        %v676 = vsel %vm632, %v578, 0
        %v679 = vsel %vm632, %v579, 0
        %v682 = vsel %vm632, %v580, 0
        %v685 = vsel %vm632, %v581, 0
        %v688 = vsel %vm632, %v582, 0
        %v691 = vsel %vm632, %v583, 0
        %v694 = vsel %vm632, %v584, 0
        %v697 = vsel %vm632, %v585, 0
        %v700 = vsel %vm632, %v586, 0
        %v703 = vsel %vm632, %v587, 0
        %v706 = vsel %vm632, %v588, 0
        %v709 = vsel %vm632, %v589, 0
        %v712 = vsel %vm632, %v590, 0
        %v715 = vsel %vm632, %v591, 0
        %v718 = vsel %vm632, %v592, 0
        %v721 = vsel %vm632, %v593, 0
        %v724 = vsel %vm632, %v594, 0
        %v727 = vsel %vm632, %v595, 0
        %v730 = vsel %vm632, %v596, 0
        %v733 = vsel %vm632, %v597, 0
        %735 = vmatprep.subr.bf16.mxu0 0
        %736 = vmatpush1.bf16.xpose.msra.mxu0 %v640
        %737 = vmatprep.subr.bf16.mxu0 0
        %738 = vmatpush1.bf16.xpose.msra.mxu0 %v643
        %739 = vmatprep.subr.bf16.mxu0 0
        %740 = vmatpush1.bf16.xpose.msra.mxu0 %v646
        %741 = vmatprep.subr.bf16.mxu0 0
        %742 = vmatpush1.bf16.xpose.msra.mxu0 %v649
        %743 = vmatprep.subr.bf16.mxu0 0
        %744 = vmatpush1.bf16.xpose.msra.mxu0 %v652
        %745 = vmatprep.subr.bf16.mxu0 0
        %746 = vmatpush1.bf16.xpose.msra.mxu0 %v655
        %747 = vmatprep.subr.bf16.mxu0 0
        %748 = vmatpush1.bf16.xpose.msra.mxu0 %v658
        %749 = vmatprep.subr.bf16.mxu0 0
        %750 = vmatpush1.bf16.xpose.msra.mxu0 %v661
        %751 = vmatprep.subr.bf16.mxu0 0
        %752 = vmatpush1.bf16.xpose.msra.mxu0 %v664
        %753 = vmatprep.subr.bf16.mxu0 0
        %754 = vmatpush1.bf16.xpose.msra.mxu0 %v667
        %755 = vmatprep.subr.bf16.mxu0 0
        %756 = vmatpush1.bf16.xpose.msra.mxu0 %v670
        %757 = vmatprep.subr.bf16.mxu0 0
        %758 = vmatpush1.bf16.xpose.msra.mxu0 %v673
        %759 = vmatprep.subr.bf16.mxu0 0
        %760 = vmatpush1.bf16.xpose.msra.mxu0 %v676
        %761 = vmatprep.subr.bf16.mxu0 0
        %762 = vmatpush1.bf16.xpose.msra.mxu0 %v679
        %763 = vmatprep.subr.bf16.mxu0 0
        %764 = vmatpush1.bf16.xpose.msra.mxu0 %v682
        %765 = vmatprep.subr.bf16.mxu0 0
        %766 = vmatpush1.bf16.xpose.msra.mxu0 %v685
        %767 = vmatprep.mubr.bf16.mxu0 0
        %768 = vmatmul.mubr.bf16.gmra.mrb[0].mxu0 %v634
        %v769 = vpop.f32.mrb[0].mxu0
        %v770 = vadd.f32 %v605, %v769
        %v771 = vpop.f32.mrb[0].mxu0
        %v772 = vadd.f32 %v605, %v771
        %v773 = vpop.f32.mrb[0].mxu0
        %v774 = vadd.f32 %v610, %v773
        %v775 = vpop.f32.mrb[0].mxu0
        %v776 = vadd.f32 %v610, %v775
        %777 = vmatprep.mubr.bf16.mxu0 0
        %778 = vmatmul.mubr.bf16.gmra.mrb[0].mxu0 %v637
        %v779 = vpop.f32.mrb[0].mxu0
        %v780 = vadd.f32 %v615, %v779
        %v781 = vpop.f32.mrb[0].mxu0
        %v782 = vadd.f32 %v615, %v781
        %v783 = vpop.f32.mrb[0].mxu0
        %v784 = vadd.f32 %v620, %v783
        %v785 = vpop.f32.mrb[0].mxu0
        %v786 = vadd.f32 %v620, %v785
        %787 = vdwg.mxu0
        %788 = vmatprep.subr.bf16.mxu0 0
        %789 = vmatpush1.bf16.xpose.msra.mxu0 %v688
        %790 = vmatprep.subr.bf16.mxu0 0
        %791 = vmatpush1.bf16.xpose.msra.mxu0 %v691
        %792 = vmatprep.subr.bf16.mxu0 0
        %793 = vmatpush1.bf16.xpose.msra.mxu0 %v694
        %794 = vmatprep.subr.bf16.mxu0 0
        %795 = vmatpush1.bf16.xpose.msra.mxu0 %v697
        %796 = vmatprep.subr.bf16.mxu0 0
        %797 = vmatpush1.bf16.xpose.msra.mxu0 %v700
        %798 = vmatprep.subr.bf16.mxu0 0
        %799 = vmatpush1.bf16.xpose.msra.mxu0 %v703
        %800 = vmatprep.subr.bf16.mxu0 0
        %801 = vmatpush1.bf16.xpose.msra.mxu0 %v706
        %802 = vmatprep.subr.bf16.mxu0 0
        %803 = vmatpush1.bf16.xpose.msra.mxu0 %v709
        %804 = vmatprep.subr.bf16.mxu0 0
        %805 = vmatpush1.bf16.xpose.msra.mxu0 %v712
        %806 = vmatprep.subr.bf16.mxu0 0
        %807 = vmatpush1.bf16.xpose.msra.mxu0 %v715
        %808 = vmatprep.subr.bf16.mxu0 0
        %809 = vmatpush1.bf16.xpose.msra.mxu0 %v718
        %810 = vmatprep.subr.bf16.mxu0 0
        %811 = vmatpush1.bf16.xpose.msra.mxu0 %v721
        %812 = vmatprep.subr.bf16.mxu0 0
        %813 = vmatpush1.bf16.xpose.msra.mxu0 %v724
        %814 = vmatprep.subr.bf16.mxu0 0
        %815 = vmatpush1.bf16.xpose.msra.mxu0 %v727
        %816 = vmatprep.subr.bf16.mxu0 0
        %817 = vmatpush1.bf16.xpose.msra.mxu0 %v730
        %818 = vmatprep.subr.bf16.mxu0 0
        %819 = vmatpush1.bf16.xpose.msra.mxu0 %v733
        %820 = vmatprep.mubr.bf16.mxu0 0
        %821 = vmatmul.mubr.bf16.gmra.mrb[0].mxu0 %v634
        %v822 = vpop.f32.mrb[0].mxu0
        %v823 = vadd.f32 %v605, %v822
        %v824 = vpop.f32.mrb[0].mxu0
        %v825 = vadd.f32 %v605, %v824
        %v826 = vpop.f32.mrb[0].mxu0
        %v827 = vadd.f32 %v610, %v826
        %v828 = vpop.f32.mrb[0].mxu0
        %v829 = vadd.f32 %v610, %v828
        %830 = vmatprep.mubr.bf16.mxu0 0
        %831 = vmatmul.mubr.bf16.gmra.mrb[0].mxu0 %v637
        %v832 = vpop.f32.mrb[0].mxu0
        %v833 = vadd.f32 %v615, %v832
        %v834 = vpop.f32.mrb[0].mxu0
        %v835 = vadd.f32 %v615, %v834
        %v836 = vpop.f32.mrb[0].mxu0
        %v837 = vadd.f32 %v620, %v836
        %v838 = vpop.f32.mrb[0].mxu0
        %v839 = vadd.f32 %v620, %v838
        %840 = vdwg.mxu0
        %v841 = vmax.f32 %v770, 0.0
        %v842 = vmax.f32 %v772, 0.0
        %v843 = vmax.f32 %v823, 0.0
        %v844 = vmax.f32 %v825, 0.0
        %v845 = vmax.f32 %v774, 0.0
        %v846 = vmax.f32 %v776, 0.0
        %v847 = vmax.f32 %v827, 0.0
        %v848 = vmax.f32 %v829, 0.0
        %v849 = vmax.f32 %v780, 0.0
        %v850 = vmax.f32 %v782, 0.0
        %v851 = vmax.f32 %v833, 0.0
        %v852 = vmax.f32 %v835, 0.0
        %v853 = vmax.f32 %v784, 0.0
        %v854 = vmax.f32 %v786, 0.0
        %v855 = vmax.f32 %v837, 0.0
        %v856 = vmax.f32 %v839, 0.0
        %v857 = vld [vmem:[%s4] sm:$0xf]
        %v858 = vld [vmem:[%s4 + $0x4] sm:$0xf]
        %v859 = vld [vmem:[%s4 + $0x8] sm:$0xf]
        %v860 = vld [vmem:[%s4 + $0xc] sm:$0xf]
        %v861 = vpack.c.bf16 %v845, %v841
        %v862 = vpack.c.bf16 %v846, %v842
        %v863 = vpack.c.bf16 %v847, %v843
        %v864 = vpack.c.bf16 %v848, %v844
        %v865 = vpack.c.bf16 %v853, %v849
        %v866 = vpack.c.bf16 %v854, %v850
        %v867 = vpack.c.bf16 %v855, %v851
        %v868 = vpack.c.bf16 %v856, %v852
        %v869 = vld [vmem:[%s5] sm:$0xff]
        %v870 = vld [vmem:[%s5 + $0x8] sm:$0xff]
        %v871 = vld [vmem:[%s5 + $0x10] sm:$0xff]
        %v872 = vld [vmem:[%s5 + $0x18] sm:$0xff]
        %874 = vset.pattern.permute.xlu0 0
        %875 = vperm.xlu0 %874, %v869
        %v876 = vpop.permute.xlu0 %875
        %879 = vset.pattern.permute.xlu0 0
        %880 = vperm.xlu0 %879, %v870
        %v881 = vpop.permute.xlu0 %880
        %884 = vset.pattern.permute.xlu0 0
        %885 = vperm.xlu0 %884, %v871
        %v886 = vpop.permute.xlu0 %885
        %889 = vset.pattern.permute.xlu0 0
        %890 = vperm.xlu0 %889, %v872
        %v891 = vpop.permute.xlu0 %890
        %v897 = vunpack.c.l.b16 %v857
        %v898 = vunpack.c.l.b16 %v858
        %v899 = vunpack.c.l.b16 %v859
        %v900 = vunpack.c.l.b16 %v860
        %v901 = vpack.c.b16 %v898, %v897
        %v902 = vpack.c.b16 %v900, %v899
        %v904 = vsel %vm632, %v901, 0
        %v907 = vsel %vm632, %v902, 0
        %909 = vmatprep.subr.bf16.mxu0 %v862
        %910 = vmatpush1.bf16.msra.mxu0 %v861
        %911 = vmatprep.subr.bf16.mxu0 %v866
        %912 = vmatpush1.bf16.msra.mxu0 %v865
        %913 = vmatprep.subr.bf16.mxu0 0
        %914 = vmatpush1.bf16.msra.mxu0 0
        %915 = vmatprep.subr.bf16.mxu0 0
        %916 = vmatpush1.bf16.msra.mxu0 0
        %917 = vmatprep.subr.bf16.mxu0 0
        %918 = vmatpush1.bf16.msra.mxu0 0
        %919 = vmatprep.subr.bf16.mxu0 0
        %920 = vmatpush1.bf16.msra.mxu0 0
        %921 = vmatprep.subr.bf16.mxu0 0
        %922 = vmatpush1.bf16.msra.mxu0 0
        %923 = vmatprep.subr.bf16.mxu0 0
        %924 = vmatpush1.bf16.msra.mxu0 0
        %925 = vmatprep.subr.bf16.mxu0 0
        %926 = vmatpush1.bf16.msra.mxu0 0
        %927 = vmatprep.subr.bf16.mxu0 0
        %928 = vmatpush1.bf16.msra.mxu0 0
        %929 = vmatprep.subr.bf16.mxu0 0
        %930 = vmatpush1.bf16.msra.mxu0 0
        %931 = vmatprep.subr.bf16.mxu0 0
        %932 = vmatpush1.bf16.msra.mxu0 0
        %933 = vmatprep.subr.bf16.mxu0 0
        %934 = vmatpush1.bf16.msra.mxu0 0
        %935 = vmatprep.subr.bf16.mxu0 0
        %936 = vmatpush1.bf16.msra.mxu0 0
        %937 = vmatprep.subr.bf16.mxu0 0
        %938 = vmatpush1.bf16.msra.mxu0 0
        %939 = vmatprep.subr.bf16.mxu0 0
        %940 = vmatpush1.bf16.msra.mxu0 0
        %941 = vmatprep.mubr.bf16.mxu0 0
        %942 = vmatmul.mubr.bf16.gmra.mrb[0].mxu0 %v904
        %v943 = vpop.f32.mrb[0].mxu0
        %v944 = vadd.f32 %v876, %v943
        %v945 = vpop.f32.mrb[0].mxu0
        %v946 = vadd.f32 %v876, %v945
        %v947 = vpop.f32.mrb[0].mxu0
        %v948 = vadd.f32 %v881, %v947
        %v949 = vpop.f32.mrb[0].mxu0
        %v950 = vadd.f32 %v881, %v949
        %951 = vmatprep.mubr.bf16.mxu0 0
        %952 = vmatmul.mubr.bf16.gmra.mrb[0].mxu0 %v907
        %v953 = vpop.f32.mrb[0].mxu0
        %v954 = vadd.f32 %v886, %v953
        %v955 = vpop.f32.mrb[0].mxu0
        %v956 = vadd.f32 %v886, %v955
        %v957 = vpop.f32.mrb[0].mxu0
        %v958 = vadd.f32 %v891, %v957
        %v959 = vpop.f32.mrb[0].mxu0
        %v960 = vadd.f32 %v891, %v959
        %961 = vdwg.mxu0
        %962 = vmatprep.subr.bf16.mxu0 %v864
        %963 = vmatpush1.bf16.msra.mxu0 %v863
        %964 = vmatprep.subr.bf16.mxu0 %v868
        %965 = vmatpush1.bf16.msra.mxu0 %v867
        %966 = vmatprep.subr.bf16.mxu0 0
        %967 = vmatpush1.bf16.msra.mxu0 0
        %968 = vmatprep.subr.bf16.mxu0 0
        %969 = vmatpush1.bf16.msra.mxu0 0
        %970 = vmatprep.subr.bf16.mxu0 0
        %971 = vmatpush1.bf16.msra.mxu0 0
        %972 = vmatprep.subr.bf16.mxu0 0
        %973 = vmatpush1.bf16.msra.mxu0 0
        %974 = vmatprep.subr.bf16.mxu0 0
        %975 = vmatpush1.bf16.msra.mxu0 0
        %976 = vmatprep.subr.bf16.mxu0 0
        %977 = vmatpush1.bf16.msra.mxu0 0
        %978 = vmatprep.subr.bf16.mxu0 0
        %979 = vmatpush1.bf16.msra.mxu0 0
        %980 = vmatprep.subr.bf16.mxu0 0
        %981 = vmatpush1.bf16.msra.mxu0 0
        %982 = vmatprep.subr.bf16.mxu0 0
        %983 = vmatpush1.bf16.msra.mxu0 0
        %984 = vmatprep.subr.bf16.mxu0 0
        %985 = vmatpush1.bf16.msra.mxu0 0
        %986 = vmatprep.subr.bf16.mxu0 0
        %987 = vmatpush1.bf16.msra.mxu0 0
        %988 = vmatprep.subr.bf16.mxu0 0
        %989 = vmatpush1.bf16.msra.mxu0 0
        %990 = vmatprep.subr.bf16.mxu0 0
        %991 = vmatpush1.bf16.msra.mxu0 0
        %992 = vmatprep.subr.bf16.mxu0 0
        %993 = vmatpush1.bf16.msra.mxu0 0
        %994 = vmatprep.mubr.bf16.mxu0 0
        %995 = vmatmul.mubr.bf16.gmra.mrb[0].mxu0 %v904
        %v996 = vpop.f32.mrb[0].mxu0
        %v997 = vadd.f32 %v876, %v996
        %v998 = vpop.f32.mrb[0].mxu0
        %v999 = vadd.f32 %v876, %v998
        %v1000 = vpop.f32.mrb[0].mxu0
        %v1001 = vadd.f32 %v881, %v1000
        %v1002 = vpop.f32.mrb[0].mxu0
        %v1003 = vadd.f32 %v881, %v1002
        %1004 = vmatprep.mubr.bf16.mxu0 0
        %1005 = vmatmul.mubr.bf16.gmra.mrb[0].mxu0 %v907
        %v1006 = vpop.f32.mrb[0].mxu0
        %v1007 = vadd.f32 %v886, %v1006
        %v1008 = vpop.f32.mrb[0].mxu0
        %v1009 = vadd.f32 %v886, %v1008
        %v1010 = vpop.f32.mrb[0].mxu0
        %v1011 = vadd.f32 %v891, %v1010
        %v1012 = vpop.f32.mrb[0].mxu0
        %v1013 = vadd.f32 %v891, %v1012
        %1014 = vdwg.mxu0
        %v1015 = vmax.f32 %v944, 0.0
        %v1016 = vmax.f32 %v946, 0.0
        %v1017 = vmax.f32 %v997, 0.0
        %v1018 = vmax.f32 %v999, 0.0
        %v1019 = vmax.f32 %v948, 0.0
        %v1020 = vmax.f32 %v950, 0.0
        %v1021 = vmax.f32 %v1001, 0.0
        %v1022 = vmax.f32 %v1003, 0.0
        %v1023 = vmax.f32 %v954, 0.0
        %v1024 = vmax.f32 %v956, 0.0
        %v1025 = vmax.f32 %v1007, 0.0
        %v1026 = vmax.f32 %v1009, 0.0
        %v1027 = vmax.f32 %v958, 0.0
        %v1028 = vmax.f32 %v960, 0.0
        %v1029 = vmax.f32 %v1011, 0.0
        %v1030 = vmax.f32 %v1013, 0.0
        %v1031 = vld [vmem:[%s6] sm:$0xff]
        %v1032 = vld [vmem:[%s6 + $0x8] sm:$0xff]
        %v1033 = vld [vmem:[%s6 + $0x10] sm:$0xff]
        %v1034 = vld [vmem:[%s6 + $0x18] sm:$0xff]
        %1036 = vset.pattern.permute.xlu0 0
        %1037 = vperm.xlu0 %1036, %v1031
        %v1038 = vpop.permute.xlu0 %1037
        %1041 = vset.pattern.permute.xlu0 0
        %1042 = vperm.xlu0 %1041, %v1032
        %v1043 = vpop.permute.xlu0 %1042
        %1046 = vset.pattern.permute.xlu0 0
        %1047 = vperm.xlu0 %1046, %v1033
        %v1048 = vpop.permute.xlu0 %1047
        %1051 = vset.pattern.permute.xlu0 0
        %1052 = vperm.xlu0 %1051, %v1034
        %v1053 = vpop.permute.xlu0 %1052
        %v1055 = vmul.f32 %v1015, %v1038
        %v1056 = vmul.f32 %v1016, %v1038
        %v1057 = vmul.f32 %v1017, %v1038
        %v1058 = vmul.f32 %v1018, %v1038
        %v1059 = vmul.f32 %v1019, %v1043
        %v1060 = vmul.f32 %v1020, %v1043
        %v1061 = vmul.f32 %v1021, %v1043
        %v1062 = vmul.f32 %v1022, %v1043
        %v1063 = vmul.f32 %v1023, %v1048
        %v1064 = vmul.f32 %v1024, %v1048
        %v1065 = vmul.f32 %v1025, %v1048
        %v1066 = vmul.f32 %v1026, %v1048
        %v1067 = vmul.f32 %v1027, %v1053
        %v1068 = vmul.f32 %v1028, %v1053
        %v1069 = vmul.f32 %v1029, %v1053
        %v1070 = vmul.f32 %v1030, %v1053
        %v1071 = vadd.f32 %v1055, %v1059
        %v1072 = vadd.f32 %v1071, %v1063
        %v1073 = vadd.f32 %v1072, %v1067
        %v1074 = vrot.slane %v1073, 4
        %v1075 = vadd.f32 %v1073, %v1074
        %v1076 = vrot.slane %v1075, 2
        %v1077 = vadd.f32 %v1075, %v1076
        %v1078 = vrot.slane %v1077, 1
        %v1079 = vadd.f32 %v1077, %v1078
        %v1080 = vadd.f32 %v1056, %v1060
        %v1081 = vadd.f32 %v1080, %v1064
        %v1082 = vadd.f32 %v1081, %v1068
        %v1083 = vrot.slane %v1082, 4
        %v1084 = vadd.f32 %v1082, %v1083
        %v1085 = vrot.slane %v1084, 2
        %v1086 = vadd.f32 %v1084, %v1085
        %v1087 = vrot.slane %v1086, 1
        %v1088 = vadd.f32 %v1086, %v1087
        %v1089 = vadd.f32 %v1057, %v1061
        %v1090 = vadd.f32 %v1089, %v1065
        %v1091 = vadd.f32 %v1090, %v1069
        %v1092 = vrot.slane %v1091, 4
        %v1093 = vadd.f32 %v1091, %v1092
        %v1094 = vrot.slane %v1093, 2
        %v1095 = vadd.f32 %v1093, %v1094
        %v1096 = vrot.slane %v1095, 1
        %v1097 = vadd.f32 %v1095, %v1096
        %v1098 = vadd.f32 %v1058, %v1062
        %v1099 = vadd.f32 %v1098, %v1066
        %v1100 = vadd.f32 %v1099, %v1070
        %v1101 = vrot.slane %v1100, 4
        %v1102 = vadd.f32 %v1100, %v1101
        %v1103 = vrot.slane %v1102, 2
        %v1104 = vadd.f32 %v1102, %v1103
        %v1105 = vrot.slane %v1104, 1
        %v1106 = vadd.f32 %v1104, %v1105
        %s1107 = sld [smem:[#allocation2]]
        %v1108 = vstv %s1107
        %v1109 = vadd.f32 %v1079, %v1108
        %v1110 = vadd.f32 %v1088, %v1108
        %v1111 = vadd.f32 %v1097, %v1108
        %v1112 = vadd.f32 %v1106, %v1108
        %v1113 = vxor.u32 %v1109, 2147483648
        %v1114 = vxor.u32 %v1110, 2147483648
        %v1115 = vxor.u32 %v1111, 2147483648
        %v1116 = vxor.u32 %v1112, 2147483648
        %v1117 = vmul.f32 %v1113, 1.442695
        %v1118 = vpow.pop %v1117
        %v1119 = vmul.f32 %v1114, 1.442695
        %v1120 = vpow.pop %v1119
        %v1121 = vmul.f32 %v1115, 1.442695
        %v1122 = vpow.pop %v1121
        %v1123 = vmul.f32 %v1116, 1.442695
        %v1124 = vpow.pop %v1123
        %v1125 = vadd.f32 %v1118, 1.0
        %v1126 = vadd.f32 %v1120, 1.0
        %v1127 = vadd.f32 %v1122, 1.0
        %v1128 = vadd.f32 %v1124, 1.0
        %v1129 = vrcp.pop %v1125
        %v1130 = vmul.f32 1.0, %v1129
        %v1131 = vrcp.pop %v1126
        %v1132 = vmul.f32 1.0, %v1131
        %v1133 = vrcp.pop %v1127
        %v1134 = vmul.f32 1.0, %v1133
        %v1135 = vrcp.pop %v1128
        %v1136 = vmul.f32 1.0, %v1135
        %v1141 = vcombine.low %v1130, %v1132
        %v1142 = vcombine.low %v1134, %v1136
        %v1144 = vunpack.c.l.s4 1966171168
        %v1145 = vunpack.c.0.s8 %v1144
        %v1146 = vlaneseq
        %v1147 = vshrl.u32 %v1146, 7
        %v1148 = vsub.s32 %v1145, %v1147
        %v1149 = vrot.slane %v1141, %v1148
        %v1151 = vunpack.c.l.s4 1966171168
        %v1152 = vunpack.c.0.s8 %v1151
        %v1153 = vlaneseq
        %v1154 = vshrl.u32 %v1153, 7
        %v1155 = vsub.s32 %v1152, %v1154
        %v1156 = vrot.slane %v1142, %v1155
        %v1157 = vcombine.low %v1149, %v1156
        %v1159 = vunpack.c.l.s4 1966171168
        %v1160 = vunpack.c.0.s8 %v1159
        %v1161 = vlaneseq
        %v1162 = vshrl.u32 %v1161, 7
        %v1163 = vsub.s32 %v1160, %v1162
        %v1164 = vrot.slane %v1157, %v1163
        %v1166 = vlaneseq
        %vm1167 = vcmp.ge.s32.totalorder %v1166, 0
        %vm1168 = vcmp.lt.s32.totalorder %v1166, 512
        %vm1169 = vmand %vm1167, %vm1168
        %1170 = vst.msk [vmem:[%s340] sm:$0xf] %vm1169, %v1164
        %s1171 = sand.u32 %s209, 1
        %s1172 = scalar_lea.sflag [#allocation4], %s1171
        %s1173 = sand.u32 %s209, 1
        %s1174 = smul.addr %s1173, 4
        %s1175 = scalar_lea.vmem [#allocation3], %s1174
        // Predicated region
        $region53: #{tpu_custom_call.1} parent=51 // pred_check
          %p1176 = pneg %p219
        $region54: #{tpu_custom_call.1} parent=51 // pred_check_branch
          %1178 = sbr.rel (%p1176) target = $region56
        $region55: #{tpu_custom_call.1} parent=51 // pred_region
          %s1180 = ssub.s32 64, 64
          %1181 = vsyncadd %s1172, %s1180
          %s1182 = smul.addr %s23, 4
          %s1183 = smul.addr %s1182, 16
          %s1184 = scalar_lea.hbm %s8, %s1183
          %s1186 = sshll.u32 %s1175, 4
          %s1187 = int_to_ptr.vmem [resolvable:$true] %s1186
          %1189 = dma.vmem_to_hbm [thread:$0]  %s1187, 64, %s1184, %s1172
        $region56: #{tpu_custom_call.1} parent=51 // pred_fallthru
          _
      $region52: #{tpu_custom_call.1} parent=5 // pred_fallthru
        _
      %p1190 = scmp.le.s32.totalorder 2, %s18
      // Predicated region
      $region57: #{tpu_custom_call.1} parent=5 // pred_check
        %p1191 = pneg %p1190
      $region58: #{tpu_custom_call.1} parent=5 // pred_check_branch
        %1193 = sbr.rel (%p1191) target = $region60
      $region59: #{tpu_custom_call.1} parent=5 // pred_region
        %s1194 = ssub.s32 %s18, 2
        // Predicated region
        $region61: #{tpu_custom_call.1} parent=59 // pred_check
          %p1195 = pneg %p225
        $region62: #{tpu_custom_call.1} parent=59 // pred_check_branch
          %1197 = sbr.rel (%p1195) target = $region64
        $region63: #{tpu_custom_call.1} parent=59 // pred_region
          %s1198 = sand.u32 %s210, 1
          %s1199 = scalar_lea.sflag [#allocation4], %s1198
          %s1200 = sand.u32 %s210, 1
          %s1201 = smul.addr %s1200, 4
          %s1202 = scalar_lea.vmem [#allocation3], %s1201
          %1203 = dma.done %s1199, 64
        $region64: #{tpu_custom_call.1} parent=59 // pred_fallthru
          _
      $region60: #{tpu_custom_call.1} parent=5 // pred_fallthru
        _
    $region6: #{tpu_custom_call.1} parent=1 // loop_footer
      %s22 = sadd.s32 1, %s18
    $region7: #{tpu_custom_call.1} parent=1 // loop_footer_branch
      %17 = sbr.rel target = $region3
    $region8: #{tpu_custom_call.1} parent=1 // loop_exit
      _
    %1204 = vsyncpa [#allocation4], 1
    %s1205 = scalar_lea.sflag [#allocation4], 1
    %1206 = vsyncpa %s1205, 1

</llo_original>
